<compile_context>
chip_gen: v6e
topology: v6e:2x2x1
jax: 0.10.0
libtpu: 0.0.40
codegen_flags: <defaults>
</compile_context>

<pallas_src>
from functools import partial

import numpy as np
import jax
import jax.numpy as jnp
from jax.experimental import pallas as pl
from jax.experimental.pallas import tpu as pltpu


# ----------------------------------------------------------------------------
# In-kernel layer norm matching LayerNormalization:
#   mu = mean, sigma = unbiased std (divisor d-1), out = (z-mu)/(sigma+eps)*a + b
# ----------------------------------------------------------------------------
def _layer_norm(z, a, b, eps):
    d = z.shape[-1]
    mu = jnp.mean(z, axis=-1, keepdims=True)
    diff = z - mu
    var = jnp.sum(diff * diff, axis=-1, keepdims=True) / (d - 1)
    sigma = jnp.sqrt(var)
    return diff / (sigma + eps) * a + b


# ----------------------------------------------------------------------------
# Fused per-layer kernel: one grid step == one (padded) sequence.
#   MHA (QKV -> attention -> combine -> proj) + residual + LN1
#   + FFN (w1, ReLU, w2) + residual + LN2
# ----------------------------------------------------------------------------
def encoder_layer_kernel(len_ref,                      # scalar prefetch (SMEM)
                         x_ref, wqkv_ref, projw_ref,
                         ln1a_ref, ln1b_ref,
                         w1_ref, b1_ref, w2_ref, b2_ref,
                         ln2a_ref, ln2b_ref,
                         o_ref,
                         *, n_head, d_k, d_v, eps):
    b = pl.program_id(0)
    length = len_ref[b]                                 # valid length of this seq
    x = x_ref[0]                                        # (Lp, d_model) f32
    Lp = x.shape[0]

    # ---- fused, lane-dense QKV projection (bf16 operands, f32 accum) ----
    # wqkv columns: [Q head0..H-1 | K head0..H-1 | V head0..H-1]; Q pre-scaled
    # by 1/temper at parameter-prep time.
    qkv = jnp.dot(x.astype(jnp.bfloat16), wqkv_ref[...],
                  preferred_element_type=jnp.float32)   # (Lp, 3*H*d_k)
    Hk = n_head * d_k
    q_all = qkv[:, :Hk]
    k_all = qkv[:, Hk:2 * Hk]
    v_all = qkv[:, 2 * Hk:]

    # key-position mask built from the prefetched length (no HBM mask tensor)
    key_idx = jax.lax.broadcasted_iota(jnp.int32, (Lp, Lp), 1)
    key_invalid = key_idx >= length                     # True == masked

    head_outs = []
    for h in range(n_head):                             # static unroll (small H)
        q_h = q_all[:, h * d_k:(h + 1) * d_k].astype(jnp.bfloat16)
        k_h = k_all[:, h * d_k:(h + 1) * d_k].astype(jnp.bfloat16)
        v_h = v_all[:, h * d_v:(h + 1) * d_v].astype(jnp.bfloat16)
        # scores (1/temper already folded into Q weights)
        s = jax.lax.dot_general(q_h, k_h, (((1,), (1,)), ((), ())),
                                preferred_element_type=jnp.float32)  # (Lp, Lp)
        s = jnp.where(key_invalid, -1e30, s)            # == masked_fill_(-inf)
        m = jnp.max(s, axis=-1, keepdims=True)
        p = jnp.exp(s - m)
        l = jnp.sum(p, axis=-1, keepdims=True)
        o_h = jnp.dot(p.astype(jnp.bfloat16), v_h,
                      preferred_element_type=jnp.float32)            # (Lp, d_v)
        head_outs.append(o_h * pl.reciprocal(l, approx=True))
    combined = jnp.concatenate(head_outs, axis=-1)      # (Lp, H*d_v), head-major

    # output projection + residual + LayerNorm1
    attn_out = jnp.dot(combined.astype(jnp.bfloat16), projw_ref[...],
                       preferred_element_type=jnp.float32)           # (Lp, d_model)
    res1 = _layer_norm(attn_out + x, ln1a_ref[...], ln1b_ref[...], eps)

    # ---- PositionwiseFeedForward + residual + LayerNorm2 ----
    h_mid = jnp.dot(res1.astype(jnp.bfloat16), w1_ref[...],
                    preferred_element_type=jnp.float32) + b1_ref[...]
    h_mid = jnp.maximum(h_mid, 0.0)                     # ReLU
    ffn = jnp.dot(h_mid.astype(jnp.bfloat16), w2_ref[...],
                  preferred_element_type=jnp.float32) + b2_ref[...]
    out = _layer_norm(ffn + res1, ln2a_ref[...], ln2b_ref[...], eps)

    # keep padded rows at exactly zero so the padded layout is stable layer-to-layer
    row_idx = jax.lax.broadcasted_iota(jnp.int32, (Lp, 1), 0)
    o_ref[0] = jnp.where(row_idx < length, out, 0.0)


def encoder_layer(x_pad, lengths, layer_p, *, n_head, d_k, d_v, eps=1e-3):
    mb, Lp, d_model = x_pad.shape
    d_ff = layer_p["w1T"].shape[1]

    def const(b, lens):                                 # weights stay resident
        return (0, 0)

    grid_spec = pltpu.PrefetchScalarGridSpec(
        num_scalar_prefetch=1,
        grid=(mb,),
        in_specs=[
            pl.BlockSpec((1, Lp, d_model), lambda b, lens: (b, 0, 0)),
            pl.BlockSpec(layer_p["wqkv"].shape, const),
            pl.BlockSpec(layer_p["proj_wT"].shape, const),
            pl.BlockSpec((1, d_model), const),
            pl.BlockSpec((1, d_model), const),
            pl.BlockSpec(layer_p["w1T"].shape, const),
            pl.BlockSpec((1, d_ff), const),
            pl.BlockSpec(layer_p["w2T"].shape, const),
            pl.BlockSpec((1, d_model), const),
            pl.BlockSpec((1, d_model), const),
            pl.BlockSpec((1, d_model), const),
        ],
        out_specs=pl.BlockSpec((1, Lp, d_model), lambda b, lens: (b, 0, 0)),
    )
    return pl.pallas_call(
        partial(encoder_layer_kernel, n_head=n_head, d_k=d_k, d_v=d_v, eps=eps),
        out_shape=jax.ShapeDtypeStruct((mb, Lp, d_model), jnp.float32),
        grid_spec=grid_spec,
        compiler_params=pltpu.CompilerParams(
            dimension_semantics=("parallel",),       # v7x: shard seqs across TCs
            vmem_limit_bytes=32 * 1024 * 1024,       # safe on v5e/v6e/v7x
        ),
    )(lengths, x_pad, layer_p["wqkv"], layer_p["proj_wT"],
      layer_p["ln1_a"], layer_p["ln1_b"],
      layer_p["w1T"], layer_p["b1"], layer_p["w2T"], layer_p["b2"],
      layer_p["ln2_a"], layer_p["ln2_b"])


# ----------------------------------------------------------------------------
# Plain-JAX glue: pad once after embedding, unpad once at the end
# ----------------------------------------------------------------------------
def pad_packed_once(x, boundaries, max_len):
    mb = len(boundaries) - 1
    d = x.shape[-1]
    padded = jnp.zeros((mb, max_len, d), x.dtype)
    for i in range(mb):
        s, e = int(boundaries[i]), int(boundaries[i + 1])
        padded = padded.at[i, : e - s, :].set(x[s:e, :])
    return padded


def unpad_once(x_pad, boundaries):
    chunks = []
    for i in range(x_pad.shape[0]):
        s, e = int(boundaries[i]), int(boundaries[i + 1])
        chunks.append(x_pad[i, : e - s, :])
    return jnp.concatenate(chunks, axis=0)


# ----------------------------------------------------------------------------
# Encoder forward (eval mode)
# ----------------------------------------------------------------------------
def encoder_forward(xs, params, boundaries, max_len):
    # Stand-in embedding (glue): res = table[xs]
    res = jnp.take(params["embedding"], xs, axis=0)     # [L_total, d_model]
    n_head, d_k, d_v = params["n_head"], params["d_k"], params["d_v"]

    lengths = jnp.asarray(np.diff(np.asarray(boundaries)), dtype=jnp.int32)
    x_pad = pad_packed_once(res, boundaries, max_len)   # pad ONCE

    for layer in params["layers"]:
        x_pad = encoder_layer(x_pad, lengths, layer,
                              n_head=n_head, d_k=d_k, d_v=d_v)

    return unpad_once(x_pad, boundaries)                # unpad ONCE


# ----------------------------------------------------------------------------
# Deterministic parameter init (torch-layout) + kernel-layout preparation
# ----------------------------------------------------------------------------
def init_params(key, d_model, n_head, d_kv, d_ff, num_layers, vocab):
    keys = jax.random.split(key, 1 + num_layers)

    def xavier(kk, shape):
        fan_in, fan_out = shape[-2], shape[-1]
        std = (2.0 / (fan_in + fan_out)) ** 0.5
        return (jax.random.normal(kk, shape) * std).astype(jnp.float32)

    raw = {
        "embedding": (jax.random.normal(keys[0], (vocab, d_model)) * 0.5).astype(jnp.float32),
        "layers": [],
    }
    for i in range(num_layers):
        k = jax.random.split(keys[1 + i], 6)
        raw["layers"].append({
            "w_qs": xavier(k[0], (n_head, d_model, d_kv)),
            "w_ks": xavier(k[1], (n_head, d_model, d_kv)),
            "w_vs": xavier(k[2], (n_head, d_model, d_kv)),
            "proj_wT": xavier(k[3], (n_head * d_kv, d_model)),   # proj.weight.T
            "ln1_a": jnp.ones((d_model,), jnp.float32),
            "ln1_b": jnp.zeros((d_model,), jnp.float32),
            "w1T": xavier(k[4], (d_model, d_ff)),                # w_1.weight.T
            "b1": jnp.zeros((d_ff,), jnp.float32),
            "w2T": xavier(k[5], (d_ff, d_model)),                # w_2.weight.T
            "b2": jnp.zeros((d_model,), jnp.float32),
            "ln2_a": jnp.ones((d_model,), jnp.float32),
            "ln2_b": jnp.zeros((d_model,), jnp.float32),
        })
    return raw


def prep_params(raw, d_model, n_head, d_kv):
    """Stack per-head Q/K/V weights into one lane-dense bf16 matrix, fold the
    1/temper attention scale into Q, and cast the big matmul weights to bf16."""
    temper = float(d_model) ** 0.5                      # matches ScaledDotProductAttention

    def stack_heads(w):                                 # [H, d_model, d] -> [d_model, H*d]
        return jnp.transpose(w, (1, 0, 2)).reshape(d_model, -1)

    params = {
        "embedding": raw["embedding"],
        "n_head": n_head,
        "d_k": d_kv,
        "d_v": d_kv,
        "layers": [],
    }
    for lyr in raw["layers"]:
        wqkv = jnp.concatenate(
            [stack_heads(lyr["w_qs"] / temper),          # fold 1/temper into Q
             stack_heads(lyr["w_ks"]),
             stack_heads(lyr["w_vs"])], axis=-1).astype(jnp.bfloat16)
        params["layers"].append({
            "wqkv": wqkv,                                      # [d_model, 3*H*d_k] bf16
            "proj_wT": lyr["proj_wT"].astype(jnp.bfloat16),    # [H*d_v, d_model] bf16
            "ln1_a": lyr["ln1_a"].reshape(1, -1),
            "ln1_b": lyr["ln1_b"].reshape(1, -1),
            "w1T": lyr["w1T"].astype(jnp.bfloat16),            # [d_model, d_ff] bf16
            "b1": lyr["b1"].reshape(1, -1),
            "w2T": lyr["w2T"].astype(jnp.bfloat16),            # [d_ff, d_model] bf16
            "b2": lyr["b2"].reshape(1, -1),
            "ln2_a": lyr["ln2_a"].reshape(1, -1),
            "ln2_b": lyr["ln2_b"].reshape(1, -1),
        })
    return params


if __name__ == "__main__":
    # Small shapes: d_model=32, 2 heads, d_kv=16, d_ff=64, 2 layers,
    # two packed sequences of lengths [6, 8] -> L_total=14, max_len=8.
    d_model, n_head, d_kv, d_ff, num_layers, vocab = 32, 2, 16, 64, 2, 50
    lengths = [6, 8]
    boundaries = np.concatenate([[0], np.cumsum(lengths)]).astype(np.int64)
    max_len = int(max(lengths))
    L_total = int(boundaries[-1])

    key = jax.random.PRNGKey(0)
    k_param, k_x = jax.random.split(key)
    raw = init_params(k_param, d_model, n_head, d_kv, d_ff, num_layers, vocab)
    params = prep_params(raw, d_model, n_head, d_kv)
    xs = jax.random.randint(k_x, (L_total,), 0, vocab, dtype=jnp.int32)

    res = encoder_forward(xs, params, boundaries, max_len)
    res = jax.block_until_ready(res)

    assert res.shape == (L_total, d_model), res.shape
    assert bool(jnp.all(jnp.isfinite(res)))
    print("KERNEL_OK")
</pallas_src>

<mosaic_0001>
module attributes {stable_mosaic.version = 11 : i64} {
  func.func @encoder_layer_kernel(%arg0: i32, %arg1: memref<2xi32, #tpu.memory_space<smem>>, %arg2: memref<1x8x32xf32, #tpu.memory_space<vmem>>, %arg3: memref<32x96xbf16, #tpu.memory_space<vmem>>, %arg4: memref<32x32xbf16, #tpu.memory_space<vmem>>, %arg5: memref<1x32xf32, #tpu.memory_space<vmem>>, %arg6: memref<1x32xf32, #tpu.memory_space<vmem>>, %arg7: memref<32x64xbf16, #tpu.memory_space<vmem>>, %arg8: memref<1x64xf32, #tpu.memory_space<vmem>>, %arg9: memref<64x32xbf16, #tpu.memory_space<vmem>>, %arg10: memref<1x32xf32, #tpu.memory_space<vmem>>, %arg11: memref<1x32xf32, #tpu.memory_space<vmem>>, %arg12: memref<1x32xf32, #tpu.memory_space<vmem>>, %arg13: memref<1x8x32xf32, #tpu.memory_space<vmem>>) attributes {dimension_semantics = [#tpu.dimension_semantics<parallel>], iteration_bounds = array<i64: 2>, scalar_prefetch = 1 : i64, scratch_operands = 0 : i64, tpu.core_type = #tpu.core_type<tc>, window_params = [{transform_indices = @transform_0, window_bounds = array<i64: 1, 8, 32>}, {pipeline_mode = #tpu.pipeline_mode<synchronous>, transform_indices = @transform_1, window_bounds = array<i64: 32, 96>}, {pipeline_mode = #tpu.pipeline_mode<synchronous>, transform_indices = @transform_2, window_bounds = array<i64: 32, 32>}, {pipeline_mode = #tpu.pipeline_mode<synchronous>, transform_indices = @transform_3, window_bounds = array<i64: 1, 32>}, {pipeline_mode = #tpu.pipeline_mode<synchronous>, transform_indices = @transform_4, window_bounds = array<i64: 1, 32>}, {pipeline_mode = #tpu.pipeline_mode<synchronous>, transform_indices = @transform_5, window_bounds = array<i64: 32, 64>}, {pipeline_mode = #tpu.pipeline_mode<synchronous>, transform_indices = @transform_6, window_bounds = array<i64: 1, 64>}, {pipeline_mode = #tpu.pipeline_mode<synchronous>, transform_indices = @transform_7, window_bounds = array<i64: 64, 32>}, {pipeline_mode = #tpu.pipeline_mode<synchronous>, transform_indices = @transform_8, window_bounds = array<i64: 1, 32>}, {pipeline_mode = #tpu.pipeline_mode<synchronous>, transform_indices = @transform_9, window_bounds = array<i64: 1, 32>}, {pipeline_mode = #tpu.pipeline_mode<synchronous>, transform_indices = @transform_10, window_bounds = array<i64: 1, 32>}, {transform_indices = @transform_11, window_bounds = array<i64: 1, 8, 32>}]} {
    %0 = arith.index_cast %arg0 : i32 to index
    %1 = memref.load %arg1[%0] : memref<2xi32, #tpu.memory_space<smem>>
    %c0 = arith.constant 0 : index
    %c0_0 = arith.constant 0 : index
    %c0_1 = arith.constant 0 : index
    %2 = vector.load %arg2[%c0, %c0_0, %c0_1] : memref<1x8x32xf32, #tpu.memory_space<vmem>>, vector<1x8x32xf32>
    %3 = vector.shape_cast %2 : vector<1x8x32xf32> to vector<8x32xf32>
    %4 = arith.truncf %3 : vector<8x32xf32> to vector<8x32xbf16>
    %c0_2 = arith.constant 0 : index
    %c0_3 = arith.constant 0 : index
    %5 = vector.load %arg3[%c0_2, %c0_3] : memref<32x96xbf16, #tpu.memory_space<vmem>>, vector<32x96xbf16>
    %cst = arith.constant dense<0.000000e+00> : vector<8x96xf32>
    %6 = tpu.matmul %4, %5, %cst {dimension_numbers = #tpu.dot_dimension_numbers<[1], [0], [0], [1], [0, 0, 1, 1], [], []>} : vector<8x32xbf16>, vector<32x96xbf16>, vector<8x96xf32> -> vector<8x96xf32>
    %7 = vector.extract_strided_slice %6 {offsets = [0, 0], sizes = [8, 32], strides = [1, 1]} : vector<8x96xf32> to vector<8x32xf32>
    %8 = vector.extract_strided_slice %6 {offsets = [0, 32], sizes = [8, 32], strides = [1, 1]} : vector<8x96xf32> to vector<8x32xf32>
    %9 = vector.extract_strided_slice %6 {offsets = [0, 64], sizes = [8, 32], strides = [1, 1]} : vector<8x96xf32> to vector<8x32xf32>
    %10 = tpu.iota {dimensions = array<i32: 1>} : vector<8x8xi32>
    %11 = vector.broadcast %1 : i32 to vector<8x8xi32>
    %12 = arith.cmpi sge, %10, %11 : vector<8x8xi32>
    %13 = vector.extract_strided_slice %7 {offsets = [0, 0], sizes = [8, 16], strides = [1, 1]} : vector<8x32xf32> to vector<8x16xf32>
    %14 = arith.truncf %13 : vector<8x16xf32> to vector<8x16xbf16>
    %15 = vector.extract_strided_slice %8 {offsets = [0, 0], sizes = [8, 16], strides = [1, 1]} : vector<8x32xf32> to vector<8x16xf32>
    %16 = arith.truncf %15 : vector<8x16xf32> to vector<8x16xbf16>
    %17 = vector.extract_strided_slice %9 {offsets = [0, 0], sizes = [8, 16], strides = [1, 1]} : vector<8x32xf32> to vector<8x16xf32>
    %18 = arith.truncf %17 : vector<8x16xf32> to vector<8x16xbf16>
    %cst_4 = arith.constant dense<0.000000e+00> : vector<8x8xf32>
    %19 = tpu.matmul %14, %16, %cst_4 {dimension_numbers = #tpu.dot_dimension_numbers<[1], [1], [0], [0], [0, 0, 1, 0], [], []>} : vector<8x16xbf16>, vector<8x16xbf16>, vector<8x8xf32> -> vector<8x8xf32>
    %cst_5 = arith.constant -1.000000e+30 : f32
    %20 = vector.broadcast %cst_5 : f32 to vector<8x8xf32>
    %21 = arith.select %12, %20, %19 : vector<8x8xi1>, vector<8x8xf32>
    %cst_6 = arith.constant dense<0xFF800000> : vector<8xf32>
    %22 = vector.multi_reduction <maximumf>, %21, %cst_6 [1] : vector<8x8xf32> to vector<8xf32>
    %23 = vector.shape_cast %22 : vector<8xf32> to vector<8x1xf32>
    %24 = vector.broadcast %23 : vector<8x1xf32> to vector<8x8xf32>
    %25 = arith.subf %21, %24 : vector<8x8xf32>
    %26 = math.exp %25 : vector<8x8xf32>
    %cst_7 = arith.constant dense<0.000000e+00> : vector<8xf32>
    %27 = vector.multi_reduction <add>, %26, %cst_7 [1] : vector<8x8xf32> to vector<8xf32>
    %28 = vector.shape_cast %27 : vector<8xf32> to vector<8x1xf32>
    %29 = arith.truncf %26 : vector<8x8xf32> to vector<8x8xbf16>
    %cst_8 = arith.constant dense<0.000000e+00> : vector<8x16xf32>
    %30 = tpu.matmul %29, %18, %cst_8 {dimension_numbers = #tpu.dot_dimension_numbers<[1], [0], [0], [1], [0, 0, 1, 1], [], []>} : vector<8x8xbf16>, vector<8x16xbf16>, vector<8x16xf32> -> vector<8x16xf32>
    %31 = tpu.reciprocal %28 {approx = true} : vector<8x1xf32> -> vector<8x1xf32>
    %32 = vector.broadcast %31 : vector<8x1xf32> to vector<8x16xf32>
    %33 = arith.mulf %30, %32 : vector<8x16xf32>
    %34 = vector.extract_strided_slice %7 {offsets = [0, 16], sizes = [8, 16], strides = [1, 1]} : vector<8x32xf32> to vector<8x16xf32>
    %35 = arith.truncf %34 : vector<8x16xf32> to vector<8x16xbf16>
    %36 = vector.extract_strided_slice %8 {offsets = [0, 16], sizes = [8, 16], strides = [1, 1]} : vector<8x32xf32> to vector<8x16xf32>
    %37 = arith.truncf %36 : vector<8x16xf32> to vector<8x16xbf16>
    %38 = vector.extract_strided_slice %9 {offsets = [0, 16], sizes = [8, 16], strides = [1, 1]} : vector<8x32xf32> to vector<8x16xf32>
    %39 = arith.truncf %38 : vector<8x16xf32> to vector<8x16xbf16>
    %cst_9 = arith.constant dense<0.000000e+00> : vector<8x8xf32>
    %40 = tpu.matmul %35, %37, %cst_9 {dimension_numbers = #tpu.dot_dimension_numbers<[1], [1], [0], [0], [0, 0, 1, 0], [], []>} : vector<8x16xbf16>, vector<8x16xbf16>, vector<8x8xf32> -> vector<8x8xf32>
    %cst_10 = arith.constant -1.000000e+30 : f32
    %41 = vector.broadcast %cst_10 : f32 to vector<8x8xf32>
    %42 = arith.select %12, %41, %40 : vector<8x8xi1>, vector<8x8xf32>
    %cst_11 = arith.constant dense<0xFF800000> : vector<8xf32>
    %43 = vector.multi_reduction <maximumf>, %42, %cst_11 [1] : vector<8x8xf32> to vector<8xf32>
    %44 = vector.shape_cast %43 : vector<8xf32> to vector<8x1xf32>
    %45 = vector.broadcast %44 : vector<8x1xf32> to vector<8x8xf32>
    %46 = arith.subf %42, %45 : vector<8x8xf32>
    %47 = math.exp %46 : vector<8x8xf32>
    %cst_12 = arith.constant dense<0.000000e+00> : vector<8xf32>
    %48 = vector.multi_reduction <add>, %47, %cst_12 [1] : vector<8x8xf32> to vector<8xf32>
    %49 = vector.shape_cast %48 : vector<8xf32> to vector<8x1xf32>
    %50 = arith.truncf %47 : vector<8x8xf32> to vector<8x8xbf16>
    %cst_13 = arith.constant dense<0.000000e+00> : vector<8x16xf32>
    %51 = tpu.matmul %50, %39, %cst_13 {dimension_numbers = #tpu.dot_dimension_numbers<[1], [0], [0], [1], [0, 0, 1, 1], [], []>} : vector<8x8xbf16>, vector<8x16xbf16>, vector<8x16xf32> -> vector<8x16xf32>
    %52 = tpu.reciprocal %49 {approx = true} : vector<8x1xf32> -> vector<8x1xf32>
    %53 = vector.broadcast %52 : vector<8x1xf32> to vector<8x16xf32>
    %54 = arith.mulf %51, %53 : vector<8x16xf32>
    %55 = tpu.concatenate %33, %54 in 1 : vector<8x16xf32>, vector<8x16xf32> -> vector<8x32xf32>
    %56 = arith.truncf %55 : vector<8x32xf32> to vector<8x32xbf16>
    %c0_14 = arith.constant 0 : index
    %c0_15 = arith.constant 0 : index
    %57 = vector.load %arg4[%c0_14, %c0_15] : memref<32x32xbf16, #tpu.memory_space<vmem>>, vector<32x32xbf16>
    %cst_16 = arith.constant dense<0.000000e+00> : vector<8x32xf32>
    %58 = tpu.matmul %56, %57, %cst_16 {dimension_numbers = #tpu.dot_dimension_numbers<[1], [0], [0], [1], [0, 0, 1, 1], [], []>} : vector<8x32xbf16>, vector<32x32xbf16>, vector<8x32xf32> -> vector<8x32xf32>
    %59 = arith.addf %58, %3 : vector<8x32xf32>
    %c0_17 = arith.constant 0 : index
    %c0_18 = arith.constant 0 : index
    %60 = vector.load %arg5[%c0_17, %c0_18] : memref<1x32xf32, #tpu.memory_space<vmem>>, vector<1x32xf32>
    %c0_19 = arith.constant 0 : index
    %c0_20 = arith.constant 0 : index
    %61 = vector.load %arg6[%c0_19, %c0_20] : memref<1x32xf32, #tpu.memory_space<vmem>>, vector<1x32xf32>
    %cst_21 = arith.constant dense<0.000000e+00> : vector<8xf32>
    %62 = vector.multi_reduction <add>, %59, %cst_21 [1] : vector<8x32xf32> to vector<8xf32>
    %63 = vector.shape_cast %62 : vector<8xf32> to vector<8x1xf32>
    %cst_22 = arith.constant 3.200000e+01 : f32
    %64 = vector.broadcast %cst_22 : f32 to vector<8x1xf32>
    %65 = arith.divf %63, %64 : vector<8x1xf32>
    %66 = vector.broadcast %65 : vector<8x1xf32> to vector<8x32xf32>
    %67 = arith.subf %59, %66 : vector<8x32xf32>
    %68 = arith.mulf %67, %67 : vector<8x32xf32>
    %cst_23 = arith.constant dense<0.000000e+00> : vector<8xf32>
    %69 = vector.multi_reduction <add>, %68, %cst_23 [1] : vector<8x32xf32> to vector<8xf32>
    %70 = vector.shape_cast %69 : vector<8xf32> to vector<8x1xf32>
    %cst_24 = arith.constant 3.100000e+01 : f32
    %71 = vector.broadcast %cst_24 : f32 to vector<8x1xf32>
    %72 = arith.divf %70, %71 : vector<8x1xf32>
    %73 = math.sqrt %72 : vector<8x1xf32>
    %cst_25 = arith.constant 1.000000e-03 : f32
    %74 = vector.broadcast %cst_25 : f32 to vector<8x1xf32>
    %75 = arith.addf %73, %74 : vector<8x1xf32>
    %76 = vector.broadcast %75 : vector<8x1xf32> to vector<8x32xf32>
    %77 = arith.divf %67, %76 : vector<8x32xf32>
    %78 = vector.broadcast %60 : vector<1x32xf32> to vector<8x32xf32>
    %79 = arith.mulf %77, %78 : vector<8x32xf32>
    %80 = vector.broadcast %61 : vector<1x32xf32> to vector<8x32xf32>
    %81 = arith.addf %79, %80 : vector<8x32xf32>
    %82 = arith.truncf %81 : vector<8x32xf32> to vector<8x32xbf16>
    %c0_26 = arith.constant 0 : index
    %c0_27 = arith.constant 0 : index
    %83 = vector.load %arg7[%c0_26, %c0_27] : memref<32x64xbf16, #tpu.memory_space<vmem>>, vector<32x64xbf16>
    %cst_28 = arith.constant dense<0.000000e+00> : vector<8x64xf32>
    %84 = tpu.matmul %82, %83, %cst_28 {dimension_numbers = #tpu.dot_dimension_numbers<[1], [0], [0], [1], [0, 0, 1, 1], [], []>} : vector<8x32xbf16>, vector<32x64xbf16>, vector<8x64xf32> -> vector<8x64xf32>
    %c0_29 = arith.constant 0 : index
    %c0_30 = arith.constant 0 : index
    %85 = vector.load %arg8[%c0_29, %c0_30] : memref<1x64xf32, #tpu.memory_space<vmem>>, vector<1x64xf32>
    %86 = vector.broadcast %85 : vector<1x64xf32> to vector<8x64xf32>
    %87 = arith.addf %84, %86 : vector<8x64xf32>
    %cst_31 = arith.constant 0.000000e+00 : f32
    %88 = vector.broadcast %cst_31 : f32 to vector<8x64xf32>
    %89 = arith.maximumf %87, %88 : vector<8x64xf32>
    %90 = arith.truncf %89 : vector<8x64xf32> to vector<8x64xbf16>
    %c0_32 = arith.constant 0 : index
    %c0_33 = arith.constant 0 : index
    %91 = vector.load %arg9[%c0_32, %c0_33] : memref<64x32xbf16, #tpu.memory_space<vmem>>, vector<64x32xbf16>
    %cst_34 = arith.constant dense<0.000000e+00> : vector<8x32xf32>
    %92 = tpu.matmul %90, %91, %cst_34 {dimension_numbers = #tpu.dot_dimension_numbers<[1], [0], [0], [1], [0, 0, 1, 1], [], []>} : vector<8x64xbf16>, vector<64x32xbf16>, vector<8x32xf32> -> vector<8x32xf32>
    %c0_35 = arith.constant 0 : index
    %c0_36 = arith.constant 0 : index
    %93 = vector.load %arg10[%c0_35, %c0_36] : memref<1x32xf32, #tpu.memory_space<vmem>>, vector<1x32xf32>
    %94 = vector.broadcast %93 : vector<1x32xf32> to vector<8x32xf32>
    %95 = arith.addf %92, %94 : vector<8x32xf32>
    %96 = arith.addf %95, %81 : vector<8x32xf32>
    %c0_37 = arith.constant 0 : index
    %c0_38 = arith.constant 0 : index
    %97 = vector.load %arg11[%c0_37, %c0_38] : memref<1x32xf32, #tpu.memory_space<vmem>>, vector<1x32xf32>
    %c0_39 = arith.constant 0 : index
    %c0_40 = arith.constant 0 : index
    %98 = vector.load %arg12[%c0_39, %c0_40] : memref<1x32xf32, #tpu.memory_space<vmem>>, vector<1x32xf32>
    %cst_41 = arith.constant dense<0.000000e+00> : vector<8xf32>
    %99 = vector.multi_reduction <add>, %96, %cst_41 [1] : vector<8x32xf32> to vector<8xf32>
    %100 = vector.shape_cast %99 : vector<8xf32> to vector<8x1xf32>
    %cst_42 = arith.constant 3.200000e+01 : f32
    %101 = vector.broadcast %cst_42 : f32 to vector<8x1xf32>
    %102 = arith.divf %100, %101 : vector<8x1xf32>
    %103 = vector.broadcast %102 : vector<8x1xf32> to vector<8x32xf32>
    %104 = arith.subf %96, %103 : vector<8x32xf32>
    %105 = arith.mulf %104, %104 : vector<8x32xf32>
    %cst_43 = arith.constant dense<0.000000e+00> : vector<8xf32>
    %106 = vector.multi_reduction <add>, %105, %cst_43 [1] : vector<8x32xf32> to vector<8xf32>
    %107 = vector.shape_cast %106 : vector<8xf32> to vector<8x1xf32>
    %cst_44 = arith.constant 3.100000e+01 : f32
    %108 = vector.broadcast %cst_44 : f32 to vector<8x1xf32>
    %109 = arith.divf %107, %108 : vector<8x1xf32>
    %110 = math.sqrt %109 : vector<8x1xf32>
    %cst_45 = arith.constant 1.000000e-03 : f32
    %111 = vector.broadcast %cst_45 : f32 to vector<8x1xf32>
    %112 = arith.addf %110, %111 : vector<8x1xf32>
    %113 = vector.broadcast %112 : vector<8x1xf32> to vector<8x32xf32>
    %114 = arith.divf %104, %113 : vector<8x32xf32>
    %115 = vector.broadcast %97 : vector<1x32xf32> to vector<8x32xf32>
    %116 = arith.mulf %114, %115 : vector<8x32xf32>
    %117 = vector.broadcast %98 : vector<1x32xf32> to vector<8x32xf32>
    %118 = arith.addf %116, %117 : vector<8x32xf32>
    %119 = tpu.iota {dimensions = array<i32: 0>} : vector<8x1xi32>
    %120 = vector.broadcast %1 : i32 to vector<8x1xi32>
    %121 = arith.cmpi slt, %119, %120 : vector<8x1xi32>
    %cst_46 = arith.constant 0.000000e+00 : f32
    %122 = vector.shape_cast %121 : vector<8x1xi1> to vector<8x1xi1>
    %123 = vector.broadcast %122 : vector<8x1xi1> to vector<8x32xi1>
    %124 = vector.broadcast %cst_46 : f32 to vector<8x32xf32>
    %125 = arith.select %123, %118, %124 : vector<8x32xi1>, vector<8x32xf32>
    %c0_47 = arith.constant 0 : index
    %c0_48 = arith.constant 0 : index
    %c0_49 = arith.constant 0 : index
    %126 = vector.load %arg13[%c0_47, %c0_48, %c0_49] : memref<1x8x32xf32, #tpu.memory_space<vmem>>, vector<1x8x32xf32>
    %127 = vector.shape_cast %126 : vector<1x8x32xf32> to vector<8x32xf32>
    %128 = vector.shape_cast %125 : vector<8x32xf32> to vector<1x8x32xf32>
    tpu.vector_store %arg13[%c0_47, %c0_48, %c0_49], %128 {strides = array<i32>} : memref<1x8x32xf32, #tpu.memory_space<vmem>>, vector<1x8x32xf32>,
    return
  }
  func.func @transform_0(%arg0: i32, %arg1: memref<2xi32, #tpu.memory_space<smem>>) -> (i32, i32, i32) {
    %c0_i32 = arith.constant 0 : i32
    %c0_i32_0 = arith.constant 0 : i32
    %c0_i32_1 = arith.constant 0 : i32
    return %arg0, %c0_i32, %c0_i32_0 : i32, i32, i32
  }
  func.func @transform_1(%arg0: i32, %arg1: memref<2xi32, #tpu.memory_space<smem>>) -> (i32, i32) {
    %c0_i32 = arith.constant 0 : i32
    %c0_i32_0 = arith.constant 0 : i32
    %c0_i32_1 = arith.constant 0 : i32
    return %c0_i32, %c0_i32_0 : i32, i32
  }
  func.func @transform_2(%arg0: i32, %arg1: memref<2xi32, #tpu.memory_space<smem>>) -> (i32, i32) {
    %c0_i32 = arith.constant 0 : i32
    %c0_i32_0 = arith.constant 0 : i32
    %c0_i32_1 = arith.constant 0 : i32
    return %c0_i32, %c0_i32_0 : i32, i32
  }
  func.func @transform_3(%arg0: i32, %arg1: memref<2xi32, #tpu.memory_space<smem>>) -> (i32, i32) {
    %c0_i32 = arith.constant 0 : i32
    %c0_i32_0 = arith.constant 0 : i32
    %c0_i32_1 = arith.constant 0 : i32
    return %c0_i32, %c0_i32_0 : i32, i32
  }
  func.func @transform_4(%arg0: i32, %arg1: memref<2xi32, #tpu.memory_space<smem>>) -> (i32, i32) {
    %c0_i32 = arith.constant 0 : i32
    %c0_i32_0 = arith.constant 0 : i32
    %c0_i32_1 = arith.constant 0 : i32
    return %c0_i32, %c0_i32_0 : i32, i32
  }
  func.func @transform_5(%arg0: i32, %arg1: memref<2xi32, #tpu.memory_space<smem>>) -> (i32, i32) {
    %c0_i32 = arith.constant 0 : i32
    %c0_i32_0 = arith.constant 0 : i32
    %c0_i32_1 = arith.constant 0 : i32
    return %c0_i32, %c0_i32_0 : i32, i32
  }
  func.func @transform_6(%arg0: i32, %arg1: memref<2xi32, #tpu.memory_space<smem>>) -> (i32, i32) {
    %c0_i32 = arith.constant 0 : i32
    %c0_i32_0 = arith.constant 0 : i32
    %c0_i32_1 = arith.constant 0 : i32
    return %c0_i32, %c0_i32_0 : i32, i32
  }
  func.func @transform_7(%arg0: i32, %arg1: memref<2xi32, #tpu.memory_space<smem>>) -> (i32, i32) {
    %c0_i32 = arith.constant 0 : i32
    %c0_i32_0 = arith.constant 0 : i32
    %c0_i32_1 = arith.constant 0 : i32
    return %c0_i32, %c0_i32_0 : i32, i32
  }
  func.func @transform_8(%arg0: i32, %arg1: memref<2xi32, #tpu.memory_space<smem>>) -> (i32, i32) {
    %c0_i32 = arith.constant 0 : i32
    %c0_i32_0 = arith.constant 0 : i32
    %c0_i32_1 = arith.constant 0 : i32
    return %c0_i32, %c0_i32_0 : i32, i32
  }
  func.func @transform_9(%arg0: i32, %arg1: memref<2xi32, #tpu.memory_space<smem>>) -> (i32, i32) {
    %c0_i32 = arith.constant 0 : i32
    %c0_i32_0 = arith.constant 0 : i32
    %c0_i32_1 = arith.constant 0 : i32
    return %c0_i32, %c0_i32_0 : i32, i32
  }
  func.func @transform_10(%arg0: i32, %arg1: memref<2xi32, #tpu.memory_space<smem>>) -> (i32, i32) {
    %c0_i32 = arith.constant 0 : i32
    %c0_i32_0 = arith.constant 0 : i32
    %c0_i32_1 = arith.constant 0 : i32
    return %c0_i32, %c0_i32_0 : i32, i32
  }
  func.func @transform_11(%arg0: i32, %arg1: memref<2xi32, #tpu.memory_space<smem>>) -> (i32, i32, i32) {
    %c0_i32 = arith.constant 0 : i32
    %c0_i32_0 = arith.constant 0 : i32
    %c0_i32_1 = arith.constant 0 : i32
    return %arg0, %c0_i32, %c0_i32_0 : i32, i32, i32
  }
}

</mosaic_0001>

<llo_original>
// kernel: tpu_custom_call.1
$region0: #{tpu_custom_call.1}
  #allocation0 [shape = 'u32[]', space=smem, size = 0x4, offset = 0x4, fixed_abs, tag = 'smem constant byte address 0x4 - core index']
  #allocation1 [shape = 'u32[144,128]{1,0:T(1,128)}', space=vmem, size = 0x12000, scoped, tag = 'internal scratch']
  #allocation2 [shape = 's32[1]{0}', space=sflag, size = 0x4, scoped, tag = 'scoped memory for tpu_custom_call.1']
  #allocation3 [shape = 'u8[512]{0}', space=smem, size = 0x200, scoped, tag = 'prefetched SMEM operand 0']
  %s0 = inlined_call_operand.hbm [shape: s32[2], index: 0, kind: input, shape index: {}]
  %s1 = inlined_call_operand.vmem [shape: f32[2,8,32], index: 1, kind: input, shape index: {}]
  %s2 = inlined_call_operand.vmem [shape: bf16[32,96], index: 2, kind: input, shape index: {}]
  %s3 = inlined_call_operand.vmem [shape: bf16[32,32], index: 3, kind: input, shape index: {}]
  %s4 = inlined_call_operand.vmem [shape: f32[1,32], index: 4, kind: input, shape index: {}]
  %s5 = inlined_call_operand.vmem [shape: f32[1,32], index: 5, kind: input, shape index: {}]
  %s6 = inlined_call_operand.hbm [shape: bf16[32,64], index: 6, kind: input, shape index: {}]
  %s7 = inlined_call_operand.vmem [shape: f32[1,64], index: 7, kind: input, shape index: {}]
  %s8 = inlined_call_operand.vmem [shape: bf16[64,32], index: 8, kind: input, shape index: {}]
  %s9 = inlined_call_operand.vmem [shape: f32[1,32], index: 9, kind: input, shape index: {}]
  %s10 = inlined_call_operand.vmem [shape: f32[1,32], index: 10, kind: input, shape index: {}]
  %s11 = inlined_call_operand.vmem [shape: f32[1,32], index: 11, kind: input, shape index: {}]
  %s12 = inlined_call_operand.hbm [shape: f32[2,8,32], index: 12, kind: output, shape index: {}]
  %s13 = sld [smem:[#allocation0]]
  $region81: #{tpu_custom_call.1} parent=0
    _
  %s15 = ssub.s32 1, %s13
  %s16 = scalar_select 0, %s15, %s13
  %18 = dma.hbm_to_smem %s0, 16, [#allocation3], [#allocation2]
  %19 = dma.done [#allocation2], 16
  %20 = sfence
  $region1: #{tpu_custom_call.1} parent=0
    #allocation4 [shape = 'u8[8192]{0}', space=vmem, size = 0x2000, scoped, tag = 'input window, operand 6, single buffered']
    #allocation5 [shape = 's32[2]{0}', space=sflag, size = 0x8, scoped, tag = 'scoped memory for tpu_custom_call.1']
    #allocation6 [shape = 's32[2]{0}', space=sflag, size = 0x8, scoped, tag = 'scoped memory for tpu_custom_call.1']
    #allocation7 [shape = 'u8[8192]{0}', space=vmem, size = 0x2000, scoped, tag = 'output window, operand 0']
    %21 = vsyncpa [#allocation5], 0
    %22 = vsyncpa [#allocation6], 0
    %s23 = scalar_lea.sflag [#allocation6], 1
    %24 = vsyncpa %s23, 0
    loop: start=0, step=1, limit=4
    $region2: #{tpu_custom_call.1} parent=1 // loop_pre_header
      _
    $region3: #{tpu_custom_call.1} parent=1 // loop_header
      %s26 = sphi 0, %s30
      %p27 = scmp.ge.s32.totalorder %s26, 4
      %s36 = sphi 0, %s38
      %s39 = sphi 0, %s36
      %s40 = sphi 0, %s39
      %s56 = sphi 0, %s40
      %s60 = sphi 0, %s60
      %s62 = sphi 0, %s60
      %s63 = sphi 0, %s62
      %s77 = sphi 0, %s63
      %s81 = sphi 0, %s81
      %s83 = sphi 0, %s81
      %s84 = sphi 0, %s83
      %s98 = sphi 0, %s84
      %s102 = sphi 0, %s102
      %s104 = sphi 0, %s102
      %s105 = sphi 0, %s104
      %s119 = sphi 0, %s105
      %s123 = sphi 0, %s123
      %s125 = sphi 0, %s123
      %s126 = sphi 0, %s125
      %s140 = sphi 0, %s126
      %s144 = sphi 0, %s144
      %s146 = sphi 0, %s144
      %s147 = sphi 0, %s146
      %s161 = sphi 0, %s147
      %s165 = sphi 0, %s165
      %s167 = sphi 0, %s165
      %s168 = sphi 0, %s167
      %s182 = sphi 0, %s168
      %s186 = sphi 0, %s186
      %s188 = sphi 0, %s186
      %s189 = sphi 0, %s188
      %s203 = sphi 0, %s189
      %s207 = sphi 0, %s207
      %s209 = sphi 0, %s207
      %s210 = sphi 0, %s209
      %s224 = sphi 0, %s210
      %s228 = sphi 0, %s228
      %s230 = sphi 0, %s228
      %s231 = sphi 0, %s230
      %s245 = sphi 0, %s231
      %s249 = sphi 0, %s249
      %s251 = sphi 0, %s249
      %s252 = sphi 0, %s251
      %s266 = sphi 0, %s252
      %s272 = sphi 0, %s274
      %s275 = sphi 0, %s272
      %s276 = sphi 0, %s275
      %s292 = sphi 0, %s276
    $region4: #{tpu_custom_call.1} parent=1 // loop_header_branch
      %29 = sbr.rel (%p27) target = $region8
    $region5: #{tpu_custom_call.1} parent=1 // loop_body
      %s31 = ssub.s32 %s26, 1
      %s32 = ssub.s32 %s26, 2
      %s33 = sadd.s32 %s26, 1
      %s34 = ssub.s32 %s26, %s33
      %p35 = scmp.eq.s32.totalorder %s34, 0
      %s37 = sadd.s32 %s36, 1
      %s38 = scalar_select %p35, %s36, %s37
      %p41 = pneg %p35
      %p42 = scmp.eq.s32.totalorder %s26, 1
      %p43 = por %p41, %p42
      %p44 = scmp.ne.s32.totalorder %s36, %s39
      %p45 = scmp.eq.s32.totalorder %s26, 0
      %p46 = por %p44, %p45
      %p47 = scmp.ne.s32.totalorder %s36, %s39
      %p48 = scmp.eq.s32.totalorder %s31, 1
      %p49 = por %p47, %p48
      %p50 = scmp.ne.s32.totalorder %s39, %s40
      %p51 = scmp.eq.s32.totalorder %s31, 0
      %p52 = por %p50, %p51
      %p53 = scmp.ne.s32.totalorder %s39, %s40
      %p54 = scmp.eq.s32.totalorder %s32, 1
      %p55 = por %p53, %p54
      %p57 = scmp.ne.s32.totalorder %s40, %s56
      %p58 = scmp.eq.s32.totalorder %s32, 0
      %p59 = por %p57, %p58
      %s61 = sadd.s32 %s60, 1
      %p64 = scmp.eq.s32.totalorder %s26, 1
      %p65 = scmp.ne.s32.totalorder %s60, %s62
      %p66 = scmp.eq.s32.totalorder %s26, 0
      %p67 = por %p65, %p66
      %p68 = scmp.ne.s32.totalorder %s60, %s62
      %p69 = scmp.eq.s32.totalorder %s31, 1
      %p70 = por %p68, %p69
      %p71 = scmp.ne.s32.totalorder %s62, %s63
      %p72 = scmp.eq.s32.totalorder %s31, 0
      %p73 = por %p71, %p72
      %p74 = scmp.ne.s32.totalorder %s62, %s63
      %p75 = scmp.eq.s32.totalorder %s32, 1
      %p76 = por %p74, %p75
      %p78 = scmp.ne.s32.totalorder %s63, %s77
      %p79 = scmp.eq.s32.totalorder %s32, 0
      %p80 = por %p78, %p79
      %s82 = sadd.s32 %s81, 1
      %p85 = scmp.eq.s32.totalorder %s26, 1
      %p86 = scmp.ne.s32.totalorder %s81, %s83
      %p87 = scmp.eq.s32.totalorder %s26, 0
      %p88 = por %p86, %p87
      %p89 = scmp.ne.s32.totalorder %s81, %s83
      %p90 = scmp.eq.s32.totalorder %s31, 1
      %p91 = por %p89, %p90
      %p92 = scmp.ne.s32.totalorder %s83, %s84
      %p93 = scmp.eq.s32.totalorder %s31, 0
      %p94 = por %p92, %p93
      %p95 = scmp.ne.s32.totalorder %s83, %s84
      %p96 = scmp.eq.s32.totalorder %s32, 1
      %p97 = por %p95, %p96
      %p99 = scmp.ne.s32.totalorder %s84, %s98
      %p100 = scmp.eq.s32.totalorder %s32, 0
      %p101 = por %p99, %p100
      %s103 = sadd.s32 %s102, 1
      %p106 = scmp.eq.s32.totalorder %s26, 1
      %p107 = scmp.ne.s32.totalorder %s102, %s104
      %p108 = scmp.eq.s32.totalorder %s26, 0
      %p109 = por %p107, %p108
      %p110 = scmp.ne.s32.totalorder %s102, %s104
      %p111 = scmp.eq.s32.totalorder %s31, 1
      %p112 = por %p110, %p111
      %p113 = scmp.ne.s32.totalorder %s104, %s105
      %p114 = scmp.eq.s32.totalorder %s31, 0
      %p115 = por %p113, %p114
      %p116 = scmp.ne.s32.totalorder %s104, %s105
      %p117 = scmp.eq.s32.totalorder %s32, 1
      %p118 = por %p116, %p117
      %p120 = scmp.ne.s32.totalorder %s105, %s119
      %p121 = scmp.eq.s32.totalorder %s32, 0
      %p122 = por %p120, %p121
      %s124 = sadd.s32 %s123, 1
      %p127 = scmp.eq.s32.totalorder %s26, 1
      %p128 = scmp.ne.s32.totalorder %s123, %s125
      %p129 = scmp.eq.s32.totalorder %s26, 0
      %p130 = por %p128, %p129
      %p131 = scmp.ne.s32.totalorder %s123, %s125
      %p132 = scmp.eq.s32.totalorder %s31, 1
      %p133 = por %p131, %p132
      %p134 = scmp.ne.s32.totalorder %s125, %s126
      %p135 = scmp.eq.s32.totalorder %s31, 0
      %p136 = por %p134, %p135
      %p137 = scmp.ne.s32.totalorder %s125, %s126
      %p138 = scmp.eq.s32.totalorder %s32, 1
      %p139 = por %p137, %p138
      %p141 = scmp.ne.s32.totalorder %s126, %s140
      %p142 = scmp.eq.s32.totalorder %s32, 0
      %p143 = por %p141, %p142
      %s145 = sadd.s32 %s144, 1
      %p148 = scmp.eq.s32.totalorder %s26, 1
      %p149 = scmp.ne.s32.totalorder %s144, %s146
      %p150 = scmp.eq.s32.totalorder %s26, 0
      %p151 = por %p149, %p150
      %p152 = scmp.ne.s32.totalorder %s144, %s146
      %p153 = scmp.eq.s32.totalorder %s31, 1
      %p154 = por %p152, %p153
      %p155 = scmp.ne.s32.totalorder %s146, %s147
      %p156 = scmp.eq.s32.totalorder %s31, 0
      %p157 = por %p155, %p156
      %p158 = scmp.ne.s32.totalorder %s146, %s147
      %p159 = scmp.eq.s32.totalorder %s32, 1
      %p160 = por %p158, %p159
      %p162 = scmp.ne.s32.totalorder %s147, %s161
      %p163 = scmp.eq.s32.totalorder %s32, 0
      %p164 = por %p162, %p163
      %s166 = sadd.s32 %s165, 1
      %p169 = scmp.eq.s32.totalorder %s26, 1
      %p170 = scmp.ne.s32.totalorder %s165, %s167
      %p171 = scmp.eq.s32.totalorder %s26, 0
      %p172 = por %p170, %p171
      %p173 = scmp.ne.s32.totalorder %s165, %s167
      %p174 = scmp.eq.s32.totalorder %s31, 1
      %p175 = por %p173, %p174
      %p176 = scmp.ne.s32.totalorder %s167, %s168
      %p177 = scmp.eq.s32.totalorder %s31, 0
      %p178 = por %p176, %p177
      %p179 = scmp.ne.s32.totalorder %s167, %s168
      %p180 = scmp.eq.s32.totalorder %s32, 1
      %p181 = por %p179, %p180
      %p183 = scmp.ne.s32.totalorder %s168, %s182
      %p184 = scmp.eq.s32.totalorder %s32, 0
      %p185 = por %p183, %p184
      %s187 = sadd.s32 %s186, 1
      %p190 = scmp.eq.s32.totalorder %s26, 1
      %p191 = scmp.ne.s32.totalorder %s186, %s188
      %p192 = scmp.eq.s32.totalorder %s26, 0
      %p193 = por %p191, %p192
      %p194 = scmp.ne.s32.totalorder %s186, %s188
      %p195 = scmp.eq.s32.totalorder %s31, 1
      %p196 = por %p194, %p195
      %p197 = scmp.ne.s32.totalorder %s188, %s189
      %p198 = scmp.eq.s32.totalorder %s31, 0
      %p199 = por %p197, %p198
      %p200 = scmp.ne.s32.totalorder %s188, %s189
      %p201 = scmp.eq.s32.totalorder %s32, 1
      %p202 = por %p200, %p201
      %p204 = scmp.ne.s32.totalorder %s189, %s203
      %p205 = scmp.eq.s32.totalorder %s32, 0
      %p206 = por %p204, %p205
      %s208 = sadd.s32 %s207, 1
      %p211 = scmp.eq.s32.totalorder %s26, 1
      %p212 = scmp.ne.s32.totalorder %s207, %s209
      %p213 = scmp.eq.s32.totalorder %s26, 0
      %p214 = por %p212, %p213
      %p215 = scmp.ne.s32.totalorder %s207, %s209
      %p216 = scmp.eq.s32.totalorder %s31, 1
      %p217 = por %p215, %p216
      %p218 = scmp.ne.s32.totalorder %s209, %s210
      %p219 = scmp.eq.s32.totalorder %s31, 0
      %p220 = por %p218, %p219
      %p221 = scmp.ne.s32.totalorder %s209, %s210
      %p222 = scmp.eq.s32.totalorder %s32, 1
      %p223 = por %p221, %p222
      %p225 = scmp.ne.s32.totalorder %s210, %s224
      %p226 = scmp.eq.s32.totalorder %s32, 0
      %p227 = por %p225, %p226
      %s229 = sadd.s32 %s228, 1
      %p232 = scmp.eq.s32.totalorder %s26, 1
      %p233 = scmp.ne.s32.totalorder %s228, %s230
      %p234 = scmp.eq.s32.totalorder %s26, 0
      %p235 = por %p233, %p234
      %p236 = scmp.ne.s32.totalorder %s228, %s230
      %p237 = scmp.eq.s32.totalorder %s31, 1
      %p238 = por %p236, %p237
      %p239 = scmp.ne.s32.totalorder %s230, %s231
      %p240 = scmp.eq.s32.totalorder %s31, 0
      %p241 = por %p239, %p240
      %p242 = scmp.ne.s32.totalorder %s230, %s231
      %p243 = scmp.eq.s32.totalorder %s32, 1
      %p244 = por %p242, %p243
      %p246 = scmp.ne.s32.totalorder %s231, %s245
      %p247 = scmp.eq.s32.totalorder %s32, 0
      %p248 = por %p246, %p247
      %s250 = sadd.s32 %s249, 1
      %p253 = scmp.eq.s32.totalorder %s26, 1
      %p254 = scmp.ne.s32.totalorder %s249, %s251
      %p255 = scmp.eq.s32.totalorder %s26, 0
      %p256 = por %p254, %p255
      %p257 = scmp.ne.s32.totalorder %s249, %s251
      %p258 = scmp.eq.s32.totalorder %s31, 1
      %p259 = por %p257, %p258
      %p260 = scmp.ne.s32.totalorder %s251, %s252
      %p261 = scmp.eq.s32.totalorder %s31, 0
      %p262 = por %p260, %p261
      %p263 = scmp.ne.s32.totalorder %s251, %s252
      %p264 = scmp.eq.s32.totalorder %s32, 1
      %p265 = por %p263, %p264
      %p267 = scmp.ne.s32.totalorder %s252, %s266
      %p268 = scmp.eq.s32.totalorder %s32, 0
      %p269 = por %p267, %p268
      %s270 = ssub.s32 %s26, %s33
      %p271 = scmp.eq.s32.totalorder %s270, 0
      %s273 = sadd.s32 %s272, 1
      %s274 = scalar_select %p271, %s272, %s273
      %p277 = pneg %p271
      %p278 = scmp.eq.s32.totalorder %s26, 1
      %p279 = por %p277, %p278
      %p280 = scmp.ne.s32.totalorder %s272, %s275
      %p281 = scmp.eq.s32.totalorder %s26, 0
      %p282 = por %p280, %p281
      %p283 = scmp.ne.s32.totalorder %s272, %s275
      %p284 = scmp.eq.s32.totalorder %s31, 1
      %p285 = por %p283, %p284
      %p286 = scmp.ne.s32.totalorder %s275, %s276
      %p287 = scmp.eq.s32.totalorder %s31, 0
      %p288 = por %p286, %p287
      %p289 = scmp.ne.s32.totalorder %s275, %s276
      %p290 = scmp.eq.s32.totalorder %s32, 1
      %p291 = por %p289, %p290
      %p293 = scmp.ne.s32.totalorder %s276, %s292
      %p294 = scmp.eq.s32.totalorder %s32, 0
      %p295 = por %p293, %p294
      %p296 = scmp.le.s32.totalorder 1, %s26
      %p297 = scmp.lt.s32.totalorder %s26, 3
      %p298 = pnand %p296, %p297
      %p299 = pneg %p298
      // Predicated region
      $region9: #{tpu_custom_call.1} parent=5 // pred_check
        _
      $region10: #{tpu_custom_call.1} parent=5 // pred_check_branch
        %301 = sbr.rel (%p298) target = $region12
      $region11: #{tpu_custom_call.1} parent=5 // pred_region
        %s302 = ssub.s32 %s26, 1
        // Predicated region
        $region13: #{tpu_custom_call.1} parent=11 // pred_check
          %p303 = pneg %p73
        $region14: #{tpu_custom_call.1} parent=11 // pred_check_branch
          %305 = sbr.rel (%p303) target = $region16
        $region15: #{tpu_custom_call.1} parent=11 // pred_region
          _
        $region16: #{tpu_custom_call.1} parent=11 // pred_fallthru
          _
        // Predicated region
        $region17: #{tpu_custom_call.1} parent=11 // pred_check
          %p306 = pneg %p94
        $region18: #{tpu_custom_call.1} parent=11 // pred_check_branch
          %308 = sbr.rel (%p306) target = $region20
        $region19: #{tpu_custom_call.1} parent=11 // pred_region
          _
        $region20: #{tpu_custom_call.1} parent=11 // pred_fallthru
          _
        // Predicated region
        $region21: #{tpu_custom_call.1} parent=11 // pred_check
          %p309 = pneg %p115
        $region22: #{tpu_custom_call.1} parent=11 // pred_check_branch
          %311 = sbr.rel (%p309) target = $region24
        $region23: #{tpu_custom_call.1} parent=11 // pred_region
          _
        $region24: #{tpu_custom_call.1} parent=11 // pred_fallthru
          _
        // Predicated region
        $region25: #{tpu_custom_call.1} parent=11 // pred_check
          %p312 = pneg %p136
        $region26: #{tpu_custom_call.1} parent=11 // pred_check_branch
          %314 = sbr.rel (%p312) target = $region28
        $region27: #{tpu_custom_call.1} parent=11 // pred_region
          _
        $region28: #{tpu_custom_call.1} parent=11 // pred_fallthru
          _
        // Predicated region
        $region29: #{tpu_custom_call.1} parent=11 // pred_check
          %p315 = pneg %p157
        $region30: #{tpu_custom_call.1} parent=11 // pred_check_branch
          %317 = sbr.rel (%p315) target = $region32
        $region31: #{tpu_custom_call.1} parent=11 // pred_region
          %s319 = ssub.s32 256, 256
          %320 = vsyncadd [#allocation5], %s319
          %s321 = sshll.u32 [#allocation4], 4
          %s322 = int_to_ptr.vmem [resolvable:$true] %s321
          %327 = dma.hbm_to_vmem [thread:$0]  %s6, 256, %s322, [#allocation5], 64, 64, 4
        $region32: #{tpu_custom_call.1} parent=11 // pred_fallthru
          _
        // Predicated region
        $region33: #{tpu_custom_call.1} parent=11 // pred_check
          %p328 = pneg %p178
        $region34: #{tpu_custom_call.1} parent=11 // pred_check_branch
          %330 = sbr.rel (%p328) target = $region36
        $region35: #{tpu_custom_call.1} parent=11 // pred_region
          _
        $region36: #{tpu_custom_call.1} parent=11 // pred_fallthru
          _
        // Predicated region
        $region37: #{tpu_custom_call.1} parent=11 // pred_check
          %p331 = pneg %p199
        $region38: #{tpu_custom_call.1} parent=11 // pred_check_branch
          %333 = sbr.rel (%p331) target = $region40
        $region39: #{tpu_custom_call.1} parent=11 // pred_region
          _
        $region40: #{tpu_custom_call.1} parent=11 // pred_fallthru
          _
        // Predicated region
        $region41: #{tpu_custom_call.1} parent=11 // pred_check
          %p334 = pneg %p220
        $region42: #{tpu_custom_call.1} parent=11 // pred_check_branch
          %336 = sbr.rel (%p334) target = $region44
        $region43: #{tpu_custom_call.1} parent=11 // pred_region
          _
        $region44: #{tpu_custom_call.1} parent=11 // pred_fallthru
          _
        // Predicated region
        $region45: #{tpu_custom_call.1} parent=11 // pred_check
          %p337 = pneg %p241
        $region46: #{tpu_custom_call.1} parent=11 // pred_check_branch
          %339 = sbr.rel (%p337) target = $region48
        $region47: #{tpu_custom_call.1} parent=11 // pred_region
          _
        $region48: #{tpu_custom_call.1} parent=11 // pred_fallthru
          _
        // Predicated region
        $region49: #{tpu_custom_call.1} parent=11 // pred_check
          %p340 = pneg %p262
        $region50: #{tpu_custom_call.1} parent=11 // pred_check_branch
          %342 = sbr.rel (%p340) target = $region52
        $region51: #{tpu_custom_call.1} parent=11 // pred_region
          _
        $region52: #{tpu_custom_call.1} parent=11 // pred_fallthru
          _
      $region12: #{tpu_custom_call.1} parent=5 // pred_fallthru
        _
      %p343 = scmp.lt.s32.totalorder %s26, 2
      // Predicated region
      $region53: #{tpu_custom_call.1} parent=5 // pred_check
        %p344 = pneg %p343
      $region54: #{tpu_custom_call.1} parent=5 // pred_check_branch
        %346 = sbr.rel (%p344) target = $region56
      $region55: #{tpu_custom_call.1} parent=5 // pred_region
        // Predicated region
        $region57: #{tpu_custom_call.1} parent=55 // pred_check
          %p347 = pneg %p46
        $region58: #{tpu_custom_call.1} parent=55 // pred_check_branch
          %349 = sbr.rel (%p347) target = $region60
        $region59: #{tpu_custom_call.1} parent=55 // pred_region
          %p350 = scmp.lt.s32.totalorder %s26, 1
          %s351 = scalar_select %p350, %s26, 1
          %s352 = smul.addr %s351, 8
          %s353 = scalar_lea.vmem %s1, %s352
        $region60: #{tpu_custom_call.1} parent=55 // pred_fallthru
          _
      $region56: #{tpu_custom_call.1} parent=5 // pred_fallthru
        _
      %p354 = scmp.le.s32.totalorder 1, %s26
      %p355 = scmp.lt.s32.totalorder %s26, 3
      %p356 = pnand %p354, %p355
      %p357 = pneg %p356
      // Predicated region
      $region61: #{tpu_custom_call.1} parent=5 // pred_check
        _
      $region62: #{tpu_custom_call.1} parent=5 // pred_check_branch
        %359 = sbr.rel (%p356) target = $region64
      $region63: #{tpu_custom_call.1} parent=5 // pred_region
        %s360 = ssub.s32 %s26, 1
        // Predicated region
        $region65: #{tpu_custom_call.1} parent=63 // pred_check
          %p361 = pneg %p157
        $region66: #{tpu_custom_call.1} parent=63 // pred_check_branch
          %363 = sbr.rel (%p361) target = $region68
        $region67: #{tpu_custom_call.1} parent=63 // pred_region
          %364 = dma.done [#allocation5], 256
        $region68: #{tpu_custom_call.1} parent=63 // pred_fallthru
          _
        %p365 = scmp.lt.s32.totalorder %s31, 1
        %s366 = scalar_select %p365, %s31, 1
        %s367 = smul.addr %s366, 8
        %s368 = scalar_lea.vmem %s1, %s367
        %p369 = pneg %p52
        %p370 = pneg %p49
        %p371 = pneg %p73
        %p372 = pneg %p70
        %p373 = pneg %p94
        %p374 = pneg %p91
        %p375 = pneg %p115
        %p376 = pneg %p112
        %p377 = pneg %p136
        %p378 = pneg %p133
        %p379 = pneg %p157
        %p380 = pneg %p154
        %p381 = pneg %p178
        %p382 = pneg %p175
        %p383 = pneg %p199
        %p384 = pneg %p196
        %p385 = pneg %p220
        %p386 = pneg %p217
        %p387 = pneg %p241
        %p388 = pneg %p238
        %p389 = pneg %p262
        %p390 = pneg %p259
        %p391 = pneg %p288
        %p392 = pneg %p285
        %s393 = sand.u32 %s275, 1
        %s394 = scalar_lea.sflag [#allocation6], %s393
        %s395 = sand.u32 %s275, 1
        %s396 = smul.addr %s395, 8
        %s397 = scalar_lea.vmem [#allocation7], %s396
        %p398 = scmp.lt.s32.totalorder %s31, 1
        %s399 = scalar_select %p398, %s31, 1
        %s400 = smul.addr %s399, 8
        %s401 = scalar_lea.vmem %s1, %s400
        %s403 = sld [smem:[#allocation3 + %s31]]
        %v404 = vld [vmem:[%s401] sm:$0xff]
        %v405 = vpack.c.bf16 %v404, %v404
        %v406 = vld [vmem:[%s2] sm:$0xf]
        %v407 = vld [vmem:[%s2 + $0x4] sm:$0xf]
        %v408 = vld [vmem:[%s2 + $0x8] sm:$0xf]
        %v409 = vld [vmem:[%s2 + $0xc] sm:$0xf]
        %v414 = vunpack.c.l.b16 %v406
        %v415 = vunpack.c.l.b16 %v407
        %v416 = vunpack.c.l.b16 %v408
        %v417 = vunpack.c.l.b16 %v409
        %v418 = vpack.c.b16 %v415, %v414
        %v419 = vpack.c.b16 %v417, %v416
        %vm422 = vcmask 261120
        %v424 = vsel %vm422, %v405, 0
        %426 = vmatprep.subr.bf16.mxu0 0
        %427 = vmatpush1.bf16.msra.mxu0 0
        %428 = vmatprep.subr.bf16.mxu0 0
        %429 = vmatpush1.bf16.msra.mxu0 0
        %430 = vmatprep.subr.bf16.mxu0 0
        %431 = vmatpush1.bf16.msra.mxu0 0
        %432 = vmatprep.subr.bf16.mxu0 0
        %433 = vmatpush1.bf16.msra.mxu0 0
        %434 = vmatprep.subr.bf16.mxu0 0
        %435 = vmatpush1.bf16.msra.mxu0 0
        %436 = vmatprep.subr.bf16.mxu0 0
        %437 = vmatpush1.bf16.msra.mxu0 0
        %438 = vmatprep.subr.bf16.mxu0 0
        %439 = vmatpush1.bf16.msra.mxu0 %v419
        %440 = vmatprep.subr.bf16.mxu0 0
        %441 = vmatpush1.bf16.msra.mxu0 %v418
        %442 = vmatprep.subr.bf16.mxu0 0
        %443 = vmatpush2.bf16.msra.mxu0 0
        %444 = vmatprep.subr.bf16.mxu0 0
        %445 = vmatpush2.bf16.msra.mxu0 0
        %446 = vmatprep.subr.bf16.mxu0 0
        %447 = vmatpush2.bf16.msra.mxu0 0
        %448 = vmatprep.subr.bf16.mxu0 0
        %449 = vmatpush2.bf16.msra.mxu0 0
        %450 = vmatprep.subr.bf16.mxu0 0
        %451 = vmatpush2.bf16.msra.mxu0 0
        %452 = vmatprep.subr.bf16.mxu0 0
        %453 = vmatpush2.bf16.msra.mxu0 0
        %454 = vmatprep.subr.bf16.mxu0 0
        %455 = vmatpush2.bf16.msra.mxu0 0
        %456 = vmatprep.subr.bf16.mxu0 0
        %457 = vmatpush2.bf16.msra.mxu0 0
        %458 = vmatprep.mubr.bf16.mxu0 0
        %459 = vmatmul.mubr.bf16.gmra.mxu0 %v424
        %v460 = vpop.f32.mrf.mxu0
        %v461 = vadd.f32 0.0, %v460
        %v462 = vpop.f32.mrf.mxu0
        %v463 = vpop.f32.mrf.mxu0
        %v464 = vpop.f32.mrf.mxu0
        %465 = vdwg.mxu0
        %v466 = vlaneseq
        %v467 = vand.u32 %v466, 127
        %v468 = vstv %s403
        %vm469 = vcmp.ge.s32.totalorder %v467, %v468
        %v470 = vpack.c.bf16 %v461, %v461
        %472 = vrot.lane.b32.xlu0 %v470, 96
        %v473 = vpop.permute.xlu0 %472
        %vm474 = vcmask 130048
        %v476 = vsel %vm474, %v470, 0
        %v479 = vsel %vm474, %v473, 0
        %481 = vmatprep.subr.bf16.mxu0 0
        %482 = vmatpush1.bf16.xpose.msra.mxu0 0
        %483 = vmatprep.subr.bf16.mxu0 0
        %484 = vmatpush1.bf16.xpose.msra.mxu0 0
        %485 = vmatprep.subr.bf16.mxu0 0
        %486 = vmatpush1.bf16.xpose.msra.mxu0 0
        %487 = vmatprep.subr.bf16.mxu0 0
        %488 = vmatpush1.bf16.xpose.msra.mxu0 0
        %489 = vmatprep.subr.bf16.mxu0 0
        %490 = vmatpush1.bf16.xpose.msra.mxu0 0
        %491 = vmatprep.subr.bf16.mxu0 0
        %492 = vmatpush1.bf16.xpose.msra.mxu0 0
        %493 = vmatprep.subr.bf16.mxu0 0
        %494 = vmatpush1.bf16.xpose.msra.mxu0 0
        %495 = vmatprep.subr.bf16.mxu0 0
        %496 = vmatpush1.bf16.xpose.msra.mxu0 %v479
        %497 = vmatprep.subr.bf16.mxu0 0
        %498 = vmatpush2.bf16.xpose.msra.mxu0 0
        %499 = vmatprep.subr.bf16.mxu0 0
        %500 = vmatpush2.bf16.xpose.msra.mxu0 0
        %501 = vmatprep.subr.bf16.mxu0 0
        %502 = vmatpush2.bf16.xpose.msra.mxu0 0
        %503 = vmatprep.subr.bf16.mxu0 0
        %504 = vmatpush2.bf16.xpose.msra.mxu0 0
        %505 = vmatprep.subr.bf16.mxu0 0
        %506 = vmatpush2.bf16.xpose.msra.mxu0 0
        %507 = vmatprep.subr.bf16.mxu0 0
        %508 = vmatpush2.bf16.xpose.msra.mxu0 0
        %509 = vmatprep.subr.bf16.mxu0 0
        %510 = vmatpush2.bf16.xpose.msra.mxu0 0
        %511 = vmatprep.subr.bf16.mxu0 0
        %512 = vmatpush2.bf16.xpose.msra.mxu0 0
        %513 = vmatprep.mubr.bf16.mxu0 0
        %514 = vmatmul.mubr.bf16.gmra.mxu0 %v476
        %v515 = vpop.f32.mrf.mxu0
        %v516 = vadd.f32 0.0, %v515
        %v517 = vpop.f32.mrf.mxu0
        %v518 = vpop.f32.mrf.mxu0
        %v519 = vpop.f32.mrf.mxu0
        %520 = vdwg.mxu0
        %v521 = vsel %vm469, -1e+30, %v516
        %vm522 = vcmask 64512
        %v523 = vsel %vm522, %v521, -inf
        %524 = vmax.xlane.f32.xlu0 %v523
        %v525 = vpop.xlane.xlu0 %524
        %v526 = vsub.f32 %v521, %v525
        %v527 = vmul.f32 %v526, 1.442695
        %v528 = vpow.pop %v527
        %v529 = vsel %vm522, %v528, 0.0
        %530 = vadd.xlane.f32.xlu0 %v529
        %v531 = vpop.xlane.xlu0 %530
        %v532 = vpack.c.bf16 %v528, %v528
        %533 = vrot.lane.b32.xlu0 %v470, 64
        %v534 = vpop.permute.xlu0 %533
        %v536 = vsel %vm522, %v532, 0
        %vm538 = vcmask 1043456
        %v540 = vsel %vm538, %v534, 0
        %542 = vmatprep.subr.bf16.mxu0 0
        %543 = vmatpush1.bf16.msra.mxu0 0
        %544 = vmatprep.subr.bf16.mxu0 0
        %545 = vmatpush1.bf16.msra.mxu0 0
        %546 = vmatprep.subr.bf16.mxu0 0
        %547 = vmatpush1.bf16.msra.mxu0 0
        %548 = vmatprep.subr.bf16.mxu0 0
        %549 = vmatpush1.bf16.msra.mxu0 0
        %550 = vmatprep.subr.bf16.mxu0 0
        %551 = vmatpush1.bf16.msra.mxu0 0
        %552 = vmatprep.subr.bf16.mxu0 0
        %553 = vmatpush1.bf16.msra.mxu0 0
        %554 = vmatprep.subr.bf16.mxu0 0
        %555 = vmatpush1.bf16.msra.mxu0 0
        %556 = vmatprep.subr.bf16.mxu0 0
        %557 = vmatpush1.bf16.msra.mxu0 %v540
        %558 = vmatprep.subr.bf16.mxu0 0
        %559 = vmatpush2.bf16.msra.mxu0 0
        %560 = vmatprep.subr.bf16.mxu0 0
        %561 = vmatpush2.bf16.msra.mxu0 0
        %562 = vmatprep.subr.bf16.mxu0 0
        %563 = vmatpush2.bf16.msra.mxu0 0
        %564 = vmatprep.subr.bf16.mxu0 0
        %565 = vmatpush2.bf16.msra.mxu0 0
        %566 = vmatprep.subr.bf16.mxu0 0
        %567 = vmatpush2.bf16.msra.mxu0 0
        %568 = vmatprep.subr.bf16.mxu0 0
        %569 = vmatpush2.bf16.msra.mxu0 0
        %570 = vmatprep.subr.bf16.mxu0 0
        %571 = vmatpush2.bf16.msra.mxu0 0
        %572 = vmatprep.subr.bf16.mxu0 0
        %573 = vmatpush2.bf16.msra.mxu0 0
        %574 = vmatprep.mubr.bf16.mxu0 0
        %575 = vmatmul.mubr.bf16.gmra.mxu0 %v536
        %v576 = vpop.f32.mrf.mxu0
        %v577 = vadd.f32 0.0, %v576
        %v578 = vpop.f32.mrf.mxu0
        %v579 = vpop.f32.mrf.mxu0
        %v580 = vpop.f32.mrf.mxu0
        %581 = vdwg.mxu0
        %v582 = vrcp.pop %v531
        %v583 = vmul.f32 %v577, %v582
        %584 = vrot.lane.b32.xlu0 %v470, 112
        %v585 = vpop.permute.xlu0 %584
        %586 = vrot.lane.b32.xlu0 %v470, 80
        %v587 = vpop.permute.xlu0 %586
        %v589 = vsel %vm474, %v585, 0
        %v592 = vsel %vm474, %v587, 0
        %594 = vmatprep.subr.bf16.mxu0 0
        %595 = vmatpush1.bf16.xpose.msra.mxu0 0
        %596 = vmatprep.subr.bf16.mxu0 0
        %597 = vmatpush1.bf16.xpose.msra.mxu0 0
        %598 = vmatprep.subr.bf16.mxu0 0
        %599 = vmatpush1.bf16.xpose.msra.mxu0 0
        %600 = vmatprep.subr.bf16.mxu0 0
        %601 = vmatpush1.bf16.xpose.msra.mxu0 0
        %602 = vmatprep.subr.bf16.mxu0 0
        %603 = vmatpush1.bf16.xpose.msra.mxu0 0
        %604 = vmatprep.subr.bf16.mxu0 0
        %605 = vmatpush1.bf16.xpose.msra.mxu0 0
        %606 = vmatprep.subr.bf16.mxu0 0
        %607 = vmatpush1.bf16.xpose.msra.mxu0 0
        %608 = vmatprep.subr.bf16.mxu0 0
        %609 = vmatpush1.bf16.xpose.msra.mxu0 %v592
        %610 = vmatprep.subr.bf16.mxu0 0
        %611 = vmatpush2.bf16.xpose.msra.mxu0 0
        %612 = vmatprep.subr.bf16.mxu0 0
        %613 = vmatpush2.bf16.xpose.msra.mxu0 0
        %614 = vmatprep.subr.bf16.mxu0 0
        %615 = vmatpush2.bf16.xpose.msra.mxu0 0
        %616 = vmatprep.subr.bf16.mxu0 0
        %617 = vmatpush2.bf16.xpose.msra.mxu0 0
        %618 = vmatprep.subr.bf16.mxu0 0
        %619 = vmatpush2.bf16.xpose.msra.mxu0 0
        %620 = vmatprep.subr.bf16.mxu0 0
        %621 = vmatpush2.bf16.xpose.msra.mxu0 0
        %622 = vmatprep.subr.bf16.mxu0 0
        %623 = vmatpush2.bf16.xpose.msra.mxu0 0
        %624 = vmatprep.subr.bf16.mxu0 0
        %625 = vmatpush2.bf16.xpose.msra.mxu0 0
        %626 = vmatprep.mubr.bf16.mxu0 0
        %627 = vmatmul.mubr.bf16.gmra.mxu0 %v589
        %v628 = vpop.f32.mrf.mxu0
        %v629 = vadd.f32 0.0, %v628
        %v630 = vpop.f32.mrf.mxu0
        %v631 = vpop.f32.mrf.mxu0
        %v632 = vpop.f32.mrf.mxu0
        %633 = vdwg.mxu0
        %v634 = vsel %vm469, -1e+30, %v629
        %v635 = vsel %vm522, %v634, -inf
        %636 = vmax.xlane.f32.xlu0 %v635
        %v637 = vpop.xlane.xlu0 %636
        %v638 = vsub.f32 %v634, %v637
        %v639 = vmul.f32 %v638, 1.442695
        %v640 = vpow.pop %v639
        %v641 = vsel %vm522, %v640, 0.0
        %642 = vadd.xlane.f32.xlu0 %v641
        %v643 = vpop.xlane.xlu0 %642
        %v644 = vpack.c.bf16 %v640, %v640
        %645 = vrot.lane.b32.xlu0 %v470, 48
        %v646 = vpop.permute.xlu0 %645
        %v648 = vsel %vm522, %v644, 0
        %v651 = vsel %vm538, %v646, 0
        %653 = vmatprep.subr.bf16.mxu0 0
        %654 = vmatpush1.bf16.msra.mxu0 0
        %655 = vmatprep.subr.bf16.mxu0 0
        %656 = vmatpush1.bf16.msra.mxu0 0
        %657 = vmatprep.subr.bf16.mxu0 0
        %658 = vmatpush1.bf16.msra.mxu0 0
        %659 = vmatprep.subr.bf16.mxu0 0
        %660 = vmatpush1.bf16.msra.mxu0 0
        %661 = vmatprep.subr.bf16.mxu0 0
        %662 = vmatpush1.bf16.msra.mxu0 0
        %663 = vmatprep.subr.bf16.mxu0 0
        %664 = vmatpush1.bf16.msra.mxu0 0
        %665 = vmatprep.subr.bf16.mxu0 0
        %666 = vmatpush1.bf16.msra.mxu0 0
        %667 = vmatprep.subr.bf16.mxu0 0
        %668 = vmatpush1.bf16.msra.mxu0 %v651
        %669 = vmatprep.subr.bf16.mxu0 0
        %670 = vmatpush2.bf16.msra.mxu0 0
        %671 = vmatprep.subr.bf16.mxu0 0
        %672 = vmatpush2.bf16.msra.mxu0 0
        %673 = vmatprep.subr.bf16.mxu0 0
        %674 = vmatpush2.bf16.msra.mxu0 0
        %675 = vmatprep.subr.bf16.mxu0 0
        %676 = vmatpush2.bf16.msra.mxu0 0
        %677 = vmatprep.subr.bf16.mxu0 0
        %678 = vmatpush2.bf16.msra.mxu0 0
        %679 = vmatprep.subr.bf16.mxu0 0
        %680 = vmatpush2.bf16.msra.mxu0 0
        %681 = vmatprep.subr.bf16.mxu0 0
        %682 = vmatpush2.bf16.msra.mxu0 0
        %683 = vmatprep.subr.bf16.mxu0 0
        %684 = vmatpush2.bf16.msra.mxu0 0
        %685 = vmatprep.mubr.bf16.mxu0 0
        %686 = vmatmul.mubr.bf16.gmra.mxu0 %v648
        %v687 = vpop.f32.mrf.mxu0
        %v688 = vadd.f32 0.0, %v687
        %v689 = vpop.f32.mrf.mxu0
        %v690 = vpop.f32.mrf.mxu0
        %v691 = vpop.f32.mrf.mxu0
        %692 = vdwg.mxu0
        %v693 = vrcp.pop %v643
        %v694 = vmul.f32 %v688, %v693
        %696 = vrot.lane.b32.xlu0 %v694, 16
        %v697 = vpop.permute.xlu0 %696
        %v699 = vsel %vm474, %v583, %v697
        %v700 = vpack.c.bf16 %v699, %v699
        %v701 = vld [vmem:[%s3] sm:$0xf]
        %v702 = vld [vmem:[%s3 + $0x4] sm:$0xf]
        %v703 = vld [vmem:[%s3 + $0x8] sm:$0xf]
        %v704 = vld [vmem:[%s3 + $0xc] sm:$0xf]
        %v709 = vunpack.c.l.b16 %v701
        %v710 = vunpack.c.l.b16 %v702
        %v711 = vunpack.c.l.b16 %v703
        %v712 = vunpack.c.l.b16 %v704
        %v713 = vpack.c.b16 %v710, %v709
        %v714 = vpack.c.b16 %v712, %v711
        %v718 = vsel %vm422, %v700, 0
        %720 = vmatprep.subr.bf16.mxu0 0
        %721 = vmatpush1.bf16.msra.mxu0 0
        %722 = vmatprep.subr.bf16.mxu0 0
        %723 = vmatpush1.bf16.msra.mxu0 0
        %724 = vmatprep.subr.bf16.mxu0 0
        %725 = vmatpush1.bf16.msra.mxu0 0
        %726 = vmatprep.subr.bf16.mxu0 0
        %727 = vmatpush1.bf16.msra.mxu0 0
        %728 = vmatprep.subr.bf16.mxu0 0
        %729 = vmatpush1.bf16.msra.mxu0 0
        %730 = vmatprep.subr.bf16.mxu0 0
        %731 = vmatpush1.bf16.msra.mxu0 0
        %732 = vmatprep.subr.bf16.mxu0 0
        %733 = vmatpush1.bf16.msra.mxu0 %v714
        %734 = vmatprep.subr.bf16.mxu0 0
        %735 = vmatpush1.bf16.msra.mxu0 %v713
        %736 = vmatprep.subr.bf16.mxu0 0
        %737 = vmatpush2.bf16.msra.mxu0 0
        %738 = vmatprep.subr.bf16.mxu0 0
        %739 = vmatpush2.bf16.msra.mxu0 0
        %740 = vmatprep.subr.bf16.mxu0 0
        %741 = vmatpush2.bf16.msra.mxu0 0
        %742 = vmatprep.subr.bf16.mxu0 0
        %743 = vmatpush2.bf16.msra.mxu0 0
        %744 = vmatprep.subr.bf16.mxu0 0
        %745 = vmatpush2.bf16.msra.mxu0 0
        %746 = vmatprep.subr.bf16.mxu0 0
        %747 = vmatpush2.bf16.msra.mxu0 0
        %748 = vmatprep.subr.bf16.mxu0 0
        %749 = vmatpush2.bf16.msra.mxu0 0
        %750 = vmatprep.subr.bf16.mxu0 0
        %751 = vmatpush2.bf16.msra.mxu0 0
        %752 = vmatprep.mubr.bf16.mxu0 0
        %753 = vmatmul.mubr.bf16.gmra.mxu0 %v718
        %v754 = vpop.f32.mrf.mxu0
        %v755 = vadd.f32 %v404, %v754
        %v756 = vpop.f32.mrf.mxu0
        %v757 = vpop.f32.mrf.mxu0
        %v758 = vpop.f32.mrf.mxu0
        %759 = vdwg.mxu0
        %v760 = vld [vmem:[%s4] sm:$0x1]
        %v761 = vld [vmem:[%s5] sm:$0x1]
        %v762 = vsel %vm422, %v755, 0.0
        %763 = vadd.xlane.f32.xlu0 %v762
        %v764 = vpop.xlane.xlu0 %763
        %v765 = vrcp.pop 32.0
        %v766 = vmul.f32 %v764, %v765
        %v767 = vsub.f32 %v755, %v766
        %v768 = vmul.f32 %v767, %v767
        %v769 = vsel %vm422, %v768, 0.0
        %770 = vadd.xlane.f32.xlu0 %v769
        %v771 = vpop.xlane.xlu0 %770
        %v772 = vrcp.pop 31.0
        %v773 = vmul.f32 %v771, %v772
        %v774 = vrsqrt.pop %v773
        %v775 = vmul.f32 %v773, %v774
        %vm776 = vcmp.eq.f32.partialorder %v773, inf
        %v777 = vsel %vm776, %v773, %v775
        %vm778 = vcmp.eq.f32.partialorder %v773, 0.0
        %v779 = vand.u32 %v773, 2147483648
        %v780 = vsel %vm778, %v779, %v777
        %v781 = vadd.f32 %v780, 0.001
        %v782 = vrcp.pop %v781
        %v783 = vmul.f32 %v767, %v782
        %v785 = vlaneseq
        %v786 = vshrl.u32 %v785, 7
        %v787 = vsub.s32 0, %v786
        %v788 = vrot.slane %v760, %v787
        %v790 = vmul.f32 %v783, %v788
        %v792 = vlaneseq
        %v793 = vshrl.u32 %v792, 7
        %v794 = vsub.s32 0, %v793
        %v795 = vrot.slane %v761, %v794
        %v797 = vadd.f32 %v790, %v795
        %v798 = vpack.c.bf16 %v797, %v797
        %v799 = vld [vmem:[#allocation4] sm:$0xf]
        %v800 = vld [vmem:[#allocation4 + $0x4] sm:$0xf]
        %v801 = vld [vmem:[#allocation4 + $0x8] sm:$0xf]
        %v802 = vld [vmem:[#allocation4 + $0xc] sm:$0xf]
        %v803 = vld [vmem:[%s7] sm:$0x1]
        %v805 = vlaneseq
        %v806 = vshrl.u32 %v805, 7
        %v807 = vsub.s32 0, %v806
        %v808 = vrot.slane %v803, %v807
        %v814 = vunpack.c.l.b16 %v799
        %v815 = vunpack.c.l.b16 %v800
        %v816 = vunpack.c.l.b16 %v801
        %v817 = vunpack.c.l.b16 %v802
        %v818 = vpack.c.b16 %v815, %v814
        %v819 = vpack.c.b16 %v817, %v816
        %v823 = vsel %vm422, %v798, 0
        %825 = vmatprep.subr.bf16.mxu0 0
        %826 = vmatpush1.bf16.msra.mxu0 0
        %827 = vmatprep.subr.bf16.mxu0 0
        %828 = vmatpush1.bf16.msra.mxu0 0
        %829 = vmatprep.subr.bf16.mxu0 0
        %830 = vmatpush1.bf16.msra.mxu0 0
        %831 = vmatprep.subr.bf16.mxu0 0
        %832 = vmatpush1.bf16.msra.mxu0 0
        %833 = vmatprep.subr.bf16.mxu0 0
        %834 = vmatpush1.bf16.msra.mxu0 0
        %835 = vmatprep.subr.bf16.mxu0 0
        %836 = vmatpush1.bf16.msra.mxu0 0
        %837 = vmatprep.subr.bf16.mxu0 0
        %838 = vmatpush1.bf16.msra.mxu0 %v819
        %839 = vmatprep.subr.bf16.mxu0 0
        %840 = vmatpush1.bf16.msra.mxu0 %v818
        %841 = vmatprep.subr.bf16.mxu0 0
        %842 = vmatpush2.bf16.msra.mxu0 0
        %843 = vmatprep.subr.bf16.mxu0 0
        %844 = vmatpush2.bf16.msra.mxu0 0
        %845 = vmatprep.subr.bf16.mxu0 0
        %846 = vmatpush2.bf16.msra.mxu0 0
        %847 = vmatprep.subr.bf16.mxu0 0
        %848 = vmatpush2.bf16.msra.mxu0 0
        %849 = vmatprep.subr.bf16.mxu0 0
        %850 = vmatpush2.bf16.msra.mxu0 0
        %851 = vmatprep.subr.bf16.mxu0 0
        %852 = vmatpush2.bf16.msra.mxu0 0
        %853 = vmatprep.subr.bf16.mxu0 0
        %854 = vmatpush2.bf16.msra.mxu0 0
        %855 = vmatprep.subr.bf16.mxu0 0
        %856 = vmatpush2.bf16.msra.mxu0 0
        %857 = vmatprep.mubr.bf16.mxu0 0
        %858 = vmatmul.mubr.bf16.gmra.mxu0 %v823
        %v859 = vpop.f32.mrf.mxu0
        %v860 = vadd.f32 %v808, %v859
        %v861 = vpop.f32.mrf.mxu0
        %v862 = vpop.f32.mrf.mxu0
        %v863 = vpop.f32.mrf.mxu0
        %864 = vdwg.mxu0
        %v865 = vmax.f32 %v860, 0.0
        %v866 = vpack.c.bf16 %v865, %v865
        %v867 = vld [vmem:[%s8] sm:$0xf]
        %v868 = vld [vmem:[%s8 + $0x4] sm:$0xf]
        %v869 = vld [vmem:[%s8 + $0x8] sm:$0xf]
        %v870 = vld [vmem:[%s8 + $0xc] sm:$0xf]
        %v871 = vld [vmem:[%s8 + $0x10] sm:$0xf]
        %v872 = vld [vmem:[%s8 + $0x14] sm:$0xf]
        %v873 = vld [vmem:[%s8 + $0x18] sm:$0xf]
        %v874 = vld [vmem:[%s8 + $0x1c] sm:$0xf]
        %v875 = vld [vmem:[%s9] sm:$0x1]
        %v877 = vlaneseq
        %v878 = vshrl.u32 %v877, 7
        %v879 = vsub.s32 0, %v878
        %v880 = vrot.slane %v875, %v879
        %v890 = vunpack.c.l.b16 %v867
        %v891 = vunpack.c.l.b16 %v868
        %v892 = vunpack.c.l.b16 %v869
        %v893 = vunpack.c.l.b16 %v870
        %v894 = vunpack.c.l.b16 %v871
        %v895 = vunpack.c.l.b16 %v872
        %v896 = vunpack.c.l.b16 %v873
        %v897 = vunpack.c.l.b16 %v874
        %v898 = vpack.c.b16 %v891, %v890
        %v899 = vpack.c.b16 %v893, %v892
        %v900 = vpack.c.b16 %v895, %v894
        %v901 = vpack.c.b16 %v897, %v896
        %vm906 = vcmask 523264
        %v908 = vsel %vm906, %v866, 0
        %910 = vmatprep.subr.bf16.mxu0 0
        %911 = vmatpush1.bf16.msra.mxu0 0
        %912 = vmatprep.subr.bf16.mxu0 0
        %913 = vmatpush1.bf16.msra.mxu0 0
        %914 = vmatprep.subr.bf16.mxu0 0
        %915 = vmatpush1.bf16.msra.mxu0 0
        %916 = vmatprep.subr.bf16.mxu0 0
        %917 = vmatpush1.bf16.msra.mxu0 0
        %918 = vmatprep.subr.bf16.mxu0 0
        %919 = vmatpush1.bf16.msra.mxu0 %v901
        %920 = vmatprep.subr.bf16.mxu0 0
        %921 = vmatpush1.bf16.msra.mxu0 %v900
        %922 = vmatprep.subr.bf16.mxu0 0
        %923 = vmatpush1.bf16.msra.mxu0 %v899
        %924 = vmatprep.subr.bf16.mxu0 0
        %925 = vmatpush1.bf16.msra.mxu0 %v898
        %926 = vmatprep.subr.bf16.mxu0 0
        %927 = vmatpush2.bf16.msra.mxu0 0
        %928 = vmatprep.subr.bf16.mxu0 0
        %929 = vmatpush2.bf16.msra.mxu0 0
        %930 = vmatprep.subr.bf16.mxu0 0
        %931 = vmatpush2.bf16.msra.mxu0 0
        %932 = vmatprep.subr.bf16.mxu0 0
        %933 = vmatpush2.bf16.msra.mxu0 0
        %934 = vmatprep.subr.bf16.mxu0 0
        %935 = vmatpush2.bf16.msra.mxu0 0
        %936 = vmatprep.subr.bf16.mxu0 0
        %937 = vmatpush2.bf16.msra.mxu0 0
        %938 = vmatprep.subr.bf16.mxu0 0
        %939 = vmatpush2.bf16.msra.mxu0 0
        %940 = vmatprep.subr.bf16.mxu0 0
        %941 = vmatpush2.bf16.msra.mxu0 0
        %942 = vmatprep.mubr.bf16.mxu0 0
        %943 = vmatmul.mubr.bf16.gmra.mxu0 %v908
        %v944 = vpop.f32.mrf.mxu0
        %v945 = vadd.f32 %v880, %v944
        %v946 = vpop.f32.mrf.mxu0
        %v947 = vpop.f32.mrf.mxu0
        %v948 = vpop.f32.mrf.mxu0
        %949 = vdwg.mxu0
        %v950 = vadd.f32 %v945, %v797
        %v951 = vld [vmem:[%s10] sm:$0x1]
        %v952 = vld [vmem:[%s11] sm:$0x1]
        %v953 = vsel %vm422, %v950, 0.0
        %954 = vadd.xlane.f32.xlu0 %v953
        %v955 = vpop.xlane.xlu0 %954
        %v956 = vmul.f32 %v955, %v765
        %v957 = vsub.f32 %v950, %v956
        %v958 = vmul.f32 %v957, %v957
        %v959 = vsel %vm422, %v958, 0.0
        %960 = vadd.xlane.f32.xlu0 %v959
        %v961 = vpop.xlane.xlu0 %960
        %v962 = vmul.f32 %v961, %v772
        %v963 = vrsqrt.pop %v962
        %v964 = vmul.f32 %v962, %v963
        %vm965 = vcmp.eq.f32.partialorder %v962, inf
        %v966 = vsel %vm965, %v962, %v964
        %vm967 = vcmp.eq.f32.partialorder %v962, 0.0
        %v968 = vand.u32 %v962, 2147483648
        %v969 = vsel %vm967, %v968, %v966
        %v970 = vadd.f32 %v969, 0.001
        %v971 = vrcp.pop %v970
        %v972 = vmul.f32 %v957, %v971
        %v974 = vlaneseq
        %v975 = vshrl.u32 %v974, 7
        %v976 = vsub.s32 0, %v975
        %v977 = vrot.slane %v951, %v976
        %v979 = vmul.f32 %v972, %v977
        %v981 = vlaneseq
        %v982 = vshrl.u32 %v981, 7
        %v983 = vsub.s32 0, %v982
        %v984 = vrot.slane %v952, %v983
        %v986 = vadd.f32 %v979, %v984
        %v987 = vlaneseq
        %v988 = vshrl.u32 %v987, 7
        %vm989 = vcmp.lt.s32.totalorder %v988, %v468
        %v990 = vsel %vm989, 1, 0
        %vm991 = vcmp.eq.s32.totalorder %v990, 1
        %v992 = vsel %vm991, %v986, 0.0
        %993 = vst.msk [vmem:[%s397] sm:$0xff] %vm422, %v992
        %s994 = sand.u32 %s275, 1
        %s995 = scalar_lea.sflag [#allocation6], %s994
        %s996 = sand.u32 %s275, 1
        %s997 = smul.addr %s996, 8
        %s998 = scalar_lea.vmem [#allocation7], %s997
        // Predicated region
        $region69: #{tpu_custom_call.1} parent=63 // pred_check
          %p999 = pneg %p285
        $region70: #{tpu_custom_call.1} parent=63 // pred_check_branch
          %1001 = sbr.rel (%p999) target = $region72
        $region71: #{tpu_custom_call.1} parent=63 // pred_region
          %s1003 = ssub.s32 128, 128
          %1004 = vsyncadd %s995, %s1003
          %s1005 = smul.addr %s31, 128
          %s1006 = scalar_lea.hbm %s12, %s1005
          %s1008 = sshll.u32 %s998, 4
          %s1009 = int_to_ptr.vmem [resolvable:$true] %s1008
          %1011 = dma.vmem_to_hbm [thread:$0]  %s1009, 128, %s1006, %s995
        $region72: #{tpu_custom_call.1} parent=63 // pred_fallthru
          _
      $region64: #{tpu_custom_call.1} parent=5 // pred_fallthru
        _
      %p1012 = scmp.le.s32.totalorder 2, %s26
      // Predicated region
      $region73: #{tpu_custom_call.1} parent=5 // pred_check
        %p1013 = pneg %p1012
      $region74: #{tpu_custom_call.1} parent=5 // pred_check_branch
        %1015 = sbr.rel (%p1013) target = $region76
      $region75: #{tpu_custom_call.1} parent=5 // pred_region
        %s1016 = ssub.s32 %s26, 2
        // Predicated region
        $region77: #{tpu_custom_call.1} parent=75 // pred_check
          %p1017 = pneg %p291
        $region78: #{tpu_custom_call.1} parent=75 // pred_check_branch
          %1019 = sbr.rel (%p1017) target = $region80
        $region79: #{tpu_custom_call.1} parent=75 // pred_region
          %s1020 = sand.u32 %s276, 1
          %s1021 = scalar_lea.sflag [#allocation6], %s1020
          %s1022 = sand.u32 %s276, 1
          %s1023 = smul.addr %s1022, 8
          %s1024 = scalar_lea.vmem [#allocation7], %s1023
          %1025 = dma.done %s1021, 128
        $region80: #{tpu_custom_call.1} parent=75 // pred_fallthru
          _
      $region76: #{tpu_custom_call.1} parent=5 // pred_fallthru
        _
    $region6: #{tpu_custom_call.1} parent=1 // loop_footer
      %s30 = sadd.s32 1, %s26
    $region7: #{tpu_custom_call.1} parent=1 // loop_footer_branch
      %25 = sbr.rel target = $region3
    $region8: #{tpu_custom_call.1} parent=1 // loop_exit
      _
    %1026 = vsyncpa [#allocation5], 1
    %s1027 = scalar_lea.sflag [#allocation5], 1
    %1028 = vsyncpa %s1027, 1
    %1029 = vsyncpa [#allocation6], 1
    %s1030 = scalar_lea.sflag [#allocation6], 1
    %1031 = vsyncpa %s1030, 1

</llo_original>
